<compile_context>
chip_gen: v7x
topology: tpu7x:2x2x1
jax: 0.10.0
libtpu: 0.0.40
codegen_flags: <defaults>
</compile_context>

<pallas_src>
import functools

import jax
import jax.numpy as jnp
from jax.experimental import pallas as pl
from jax.experimental.pallas import tpu as pltpu


def _round_up(n, m):
    return ((n + m - 1) // m) * m


def _gem_kernel(p_ref, x_ref, o_ref, acc_ref, *, hw, eps, tb, thw):
    """One (row-tile, spatial-tile) step of the generalized-mean pooling."""
    j = pl.program_id(1)                      # spatial-reduction grid axis (last)

    @pl.when(j == 0)
    def _init():
        acc_ref[...] = jnp.zeros_like(acc_ref)

    p = p_ref[0]                              # learnable exponent (scalar, SMEM)

    x = x_ref[...]                            # [TB, THW] f32 tile
    xc = jnp.maximum(x, eps)                  # clamp(min=eps)  (strictly > 0)
    xp = jnp.exp(p * jnp.log(xc))             # x ** p  (EUP log/exp, safe: xc >= eps)

    # Mask spatial padding columns so they do not contribute to the mean.
    col = j * thw + jax.lax.broadcasted_iota(jnp.int32, (tb, thw), 1)
    xp = jnp.where(col < hw, xp, 0.0)

    acc_ref[...] += jnp.sum(xp, axis=1, keepdims=True)   # [TB, 1] partial sums

    @pl.when(j == pl.num_programs(1) - 1)
    def _finalize():
        mean = acc_ref[...] * (1.0 / hw)      # true mean over H*W (padding masked)
        o_ref[...] = jnp.exp(jnp.log(mean) / p)          # mean ** (1/p)


def gem_forward(x, p, eps=1e-6):
    """GeM pooling: x [B, C, H, W] -> [B, C, 1, 1]."""
    B, C, H, W = x.shape
    BC, HW = B * C, H * W

    x2 = x.reshape(BC, HW).astype(jnp.float32)

    # (8, 128)-aligned tiles; cap so double-buffered inputs stay well under the
    # v7x 64 MiB / default-scoped VMEM budgets (256 * 2048 * 4B = 2 MiB/buffer).
    TB = min(256, _round_up(BC, 8))
    THW = min(2048, _round_up(HW, 128))
    BCp = _round_up(BC, TB)
    HWp = _round_up(HW, THW)
    x2 = jnp.pad(x2, ((0, BCp - BC), (0, HWp - HW)))

    grid = (BCp // TB, HWp // THW)            # (parallel row tiles, reduction last)

    kernel = functools.partial(_gem_kernel, hw=HW, eps=float(eps), tb=TB, thw=THW)

    out = pl.pallas_call(
        kernel,
        out_shape=jax.ShapeDtypeStruct((BCp, 1), jnp.float32),
        grid=grid,
        in_specs=[
            # scalar exponent p, resident in SMEM for the whole grid
            pl.BlockSpec(memory_space=pltpu.MemorySpace.SMEM),
            # x tile: rows on sublanes, spatial reduction on lanes
            pl.BlockSpec((TB, THW), lambda i, j: (i, j)),
        ],
        # same output block across the reduction axis -> VMEM-resident result
        out_specs=pl.BlockSpec((TB, 1), lambda i, j: (i, 0)),
        scratch_shapes=[pltpu.VMEM((TB, 1), jnp.float32)],   # partial-sum accumulator
        compiler_params=pltpu.CompilerParams(
            dimension_semantics=("parallel", "arbitrary"),
            vmem_limit_bytes=32 * 1024 * 1024,
        ),
        cost_estimate=pl.CostEstimate(
            flops=5 * BC * HW,
            transcendentals=2 * BC * HW + 2 * BC,
            bytes_accessed=BCp * HWp * 4 + BCp * 4 + 4,
        ),
    )(jnp.asarray(p, jnp.float32).reshape(1), x2)

    return out[:BC, 0].reshape(B, C, 1, 1)


if __name__ == "__main__":
    key = jax.random.PRNGKey(0)
    (kx,) = jax.random.split(key, 1)

    B, C, H, W = 2, 4, 16, 16
    eps = 1e-6
    x = jax.random.normal(kx, (B, C, H, W), jnp.float32)   # exercises the clamp path
    p = jnp.ones((1,), jnp.float32) * 3.0                  # nn.Parameter(torch.ones(1) * 3)

    y = jax.jit(gem_forward)(x, p)
    jax.block_until_ready(y)

    # pure-JAX reference (same math as the PyTorch forward)
    xc = jnp.maximum(x, eps)
    ref = jnp.power(jnp.mean(jnp.power(xc, p[0]), axis=(2, 3), keepdims=True), 1.0 / p[0])

    assert y.shape == (B, C, 1, 1)
    assert bool(jnp.all(jnp.isfinite(y)))
    assert bool(jnp.allclose(y, ref, rtol=1e-4, atol=1e-5)), (y, ref)
    print("KERNEL_OK")
</pallas_src>

<mosaic_0001>
module attributes {stable_mosaic.version = 11 : i64} {
  func.func @_gem_kernel(%arg0: i32, %arg1: i32, %arg2: memref<1xf32, #tpu.memory_space<smem>>, %arg3: memref<8x256xf32, #tpu.memory_space<vmem>>, %arg4: memref<8x1xf32, #tpu.memory_space<vmem>>, %arg5: memref<8x1xf32, #tpu.memory_space<vmem>>) attributes {dimension_semantics = [#tpu.dimension_semantics<parallel>, #tpu.dimension_semantics<arbitrary>], iteration_bounds = array<i64: 1, 1>, scalar_prefetch = 0 : i64, scratch_operands = 1 : i64, tpu.core_type = #tpu.core_type<tc>, window_params = [{transform_indices = @transform_0, window_bounds = array<i64: 1>}, {transform_indices = @transform_1, window_bounds = array<i64: 8, 256>}, {transform_indices = @transform_2, window_bounds = array<i64: 8, 1>}]} {
    %c0_i32 = arith.constant 0 : i32
    %0 = arith.cmpi eq, %arg1, %c0_i32 : i32
    %1 = arith.extui %0 : i1 to i32
    %c0_i32_0 = arith.constant 0 : i32
    %2 = arith.cmpi ne, %1, %c0_i32_0 : i32
    scf.if %2 {
      %cst_12 = arith.constant 0.000000e+00 : f32
      %27 = vector.broadcast %cst_12 : f32 to vector<8x1xf32>
      %c0_13 = arith.constant 0 : index
      %c0_14 = arith.constant 0 : index
      %28 = vector.load %arg5[%c0_13, %c0_14] : memref<8x1xf32, #tpu.memory_space<vmem>>, vector<8x1xf32>
      tpu.vector_store %arg5[%c0_13, %c0_14], %27 {strides = array<i32>} : memref<8x1xf32, #tpu.memory_space<vmem>>, vector<8x1xf32>,
    } else {
    }
    %c0 = arith.constant 0 : index
    %3 = memref.load %arg2[%c0] : memref<1xf32, #tpu.memory_space<smem>>
    %c0_1 = arith.constant 0 : index
    %c0_2 = arith.constant 0 : index
    %4 = vector.load %arg3[%c0_1, %c0_2] : memref<8x256xf32, #tpu.memory_space<vmem>>, vector<8x256xf32>
    %cst = arith.constant 9.99999997E-7 : f32
    %5 = vector.broadcast %cst : f32 to vector<8x256xf32>
    %6 = arith.maximumf %4, %5 : vector<8x256xf32>
    %7 = math.log %6 : vector<8x256xf32>
    %8 = vector.broadcast %3 : f32 to vector<8x256xf32>
    %9 = arith.mulf %8, %7 : vector<8x256xf32>
    %10 = math.exp %9 : vector<8x256xf32>
    %c256_i32 = arith.constant 256 : i32
    %11 = arith.muli %arg1, %c256_i32 : i32
    %12 = tpu.iota {dimensions = array<i32: 1>} : vector<8x256xi32>
    %13 = vector.broadcast %11 : i32 to vector<8x256xi32>
    %14 = arith.addi %13, %12 : vector<8x256xi32>
    %c256_i32_3 = arith.constant 256 : i32
    %15 = vector.broadcast %c256_i32_3 : i32 to vector<8x256xi32>
    %16 = arith.cmpi slt, %14, %15 : vector<8x256xi32>
    %cst_4 = arith.constant 0.000000e+00 : f32
    %17 = vector.broadcast %cst_4 : f32 to vector<8x256xf32>
    %18 = arith.select %16, %10, %17 : vector<8x256xi1>, vector<8x256xf32>
    %c0_5 = arith.constant 0 : index
    %c0_6 = arith.constant 0 : index
    %19 = vector.load %arg5[%c0_5, %c0_6] : memref<8x1xf32, #tpu.memory_space<vmem>>, vector<8x1xf32>
    %cst_7 = arith.constant dense<0.000000e+00> : vector<8xf32>
    %20 = vector.multi_reduction <add>, %18, %cst_7 [1] : vector<8x256xf32> to vector<8xf32>
    %21 = vector.shape_cast %20 : vector<8xf32> to vector<8x1xf32>
    %22 = arith.addf %19, %21 : vector<8x1xf32>
    %c0_8 = arith.constant 0 : index
    %c0_9 = arith.constant 0 : index
    %23 = vector.load %arg5[%c0_8, %c0_9] : memref<8x1xf32, #tpu.memory_space<vmem>>, vector<8x1xf32>
    tpu.vector_store %arg5[%c0_8, %c0_9], %22 {strides = array<i32>} : memref<8x1xf32, #tpu.memory_space<vmem>>, vector<8x1xf32>,
    %c0_i32_10 = arith.constant 0 : i32
    %24 = arith.cmpi eq, %arg1, %c0_i32_10 : i32
    %25 = arith.extui %24 : i1 to i32
    %c0_i32_11 = arith.constant 0 : i32
    %26 = arith.cmpi ne, %25, %c0_i32_11 : i32
    scf.if %26 {
      %c0_12 = arith.constant 0 : index
      %c0_13 = arith.constant 0 : index
      %27 = vector.load %arg5[%c0_12, %c0_13] : memref<8x1xf32, #tpu.memory_space<vmem>>, vector<8x1xf32>
      %cst_14 = arith.constant 3.906250e-03 : f32
      %28 = vector.broadcast %cst_14 : f32 to vector<8x1xf32>
      %29 = arith.mulf %27, %28 : vector<8x1xf32>
      %30 = math.log %29 : vector<8x1xf32>
      %31 = vector.broadcast %3 : f32 to vector<8x1xf32>
      %32 = arith.divf %30, %31 : vector<8x1xf32>
      %33 = math.exp %32 : vector<8x1xf32>
      %c0_15 = arith.constant 0 : index
      %c0_16 = arith.constant 0 : index
      %34 = vector.load %arg4[%c0_15, %c0_16] : memref<8x1xf32, #tpu.memory_space<vmem>>, vector<8x1xf32>
      tpu.vector_store %arg4[%c0_15, %c0_16], %33 {strides = array<i32>} : memref<8x1xf32, #tpu.memory_space<vmem>>, vector<8x1xf32>,
    } else {
    }
    return
  }
  func.func @transform_0(%arg0: i32, %arg1: i32) -> i32 {
    %c0_i32 = arith.constant 0 : i32
    %c0_i32_0 = arith.constant 0 : i32
    return %c0_i32 : i32
  }
  func.func @transform_1(%arg0: i32, %arg1: i32) -> (i32, i32) {
    %c0_i32 = arith.constant 0 : i32
    return %arg0, %arg1 : i32, i32
  }
  func.func @transform_2(%arg0: i32, %arg1: i32) -> (i32, i32) {
    %c0_i32 = arith.constant 0 : i32
    %c0_i32_0 = arith.constant 0 : i32
    return %arg0, %c0_i32 : i32, i32
  }
}

</mosaic_0001>

<llo_original>
// kernel: squeeze.1
$region0: #{squeeze.1}
  %s0 = inlined_call_operand.vmem [shape: f32[8], index: 0, kind: input, shape index: {}]
  %s1 = inlined_call_operand.hbm [shape: f32[2,4,1,1], index: 1, kind: output, shape index: {}]
  $region1: #{squeeze.1} parent=0
    #allocation0 [shape = 'u8[1024]{0}', space=vmem, size = 0x400, scoped, tag = 'operand span for operand 1']
    #allocation1 [shape = 's32[1]{0}', space=sflag, size = 0x4, scoped, tag = 'scoped memory for squeeze.1']
    #allocation2 [shape = 'u8[4096]{0}', space=vmem, size = 0x1000, scoped, tag = 'scoped mem for output reshape']
    #allocation3 [shape = 'u8[4096]{0}', space=vmem, size = 0x1000, scoped, tag = 'scoped mem for input reshape']
    %2 = vsyncpa [#allocation1], 0
    %s4 = sshllo.u32 0, 1
    %v5 = vld [vmem:[%s0] sm:%s4]
    %6 = vst [vmem:[#allocation3] sm:%s4] %v5
    %v7 = vld [vmem:[#allocation3] sm:$0x1]
    %vm8 = vcmask 31744
    %9 = vst.msk [vmem:[#allocation2] sm:$0x1] %vm8, %v7
    %v10 = vld [vmem:[#allocation3] sm:$0x1]
    %11 = vrot.lane.b32.xlu0 %v10, 124
    %v12 = vpop.permute.xlu0 %11
    %vm13 = vcmask 31744
    %s14 = scalar_lea.vmem [#allocation2], 1
    %15 = vst.msk [vmem:[%s14] sm:$0x1] %vm13, %v12
    %s17 = sshllo.u32 0, 2
    %v19 = vld [vmem:[#allocation2] sm:%s17]
    %s20 = sshllo.u32 0, 2
    %21 = vst [vmem:[#allocation0] sm:%s20] %v19
    %s23 = ssub.s32 32, 32
    %24 = vsyncadd [#allocation1], %s23
    %s26 = sshll.u32 [#allocation0], 4
    %s27 = int_to_ptr.vmem [resolvable:$true] %s26
    %29 = dma.vmem_to_hbm [thread:$0]  %s27, 32, %s1, [#allocation1]
    %30 = dma.done [#allocation1], 32
    %31 = vsyncpa [#allocation1], 1

// kernel: gem_forward.1
$region0: #{gem_forward.1}
  #allocation0 [shape = 'u32[]', space=smem, size = 0x4, offset = 0x4, fixed_abs, tag = 'smem constant byte address 0x4 - core index']
  #allocation1 [shape = 'u32[144,128]{1,0:T(1,128)}', space=vmem, size = 0x12000, scoped, tag = 'internal scratch']
  #allocation2 [shape = 'f32[8,1]{1,0:T(8,128)}', space=vmem, size = 0x1000, scoped, tag = 'scratch operand']
  #allocation3 [shape = 'f32[1]{0:T(128)S(6)}', space=smem, size = 0x200, scoped, tag = 'scoped memory for gem_forward.1']
  %s0 = inlined_call_operand.<no memory space> [shape: f32[1], index: 0, kind: input, shape index: {}]
  %s1 = inlined_call_operand.vmem [shape: f32[8,256], index: 1, kind: input, shape index: {}]
  %s2 = inlined_call_operand.vmem [shape: f32[8,1], index: 2, kind: output, shape index: {}]
  %s3 = sld [smem:[#allocation0]]
  $region26: #{gem_forward.1} parent=0
    _
  %s5 = ssub.s32 1, %s3
  %s6 = scalar_select 0, %s5, %s3
  %7 = sst [smem:[#allocation3]] %s0
  // Predicated region
  $region2: #{gem_forward.1} parent=0 // pred_check
    _
  $region3: #{gem_forward.1} parent=0 // pred_check_branch
    %9 = sbr.rel (0) target = $region5
  $region4: #{gem_forward.1} parent=0 // pred_region
    _
  $region5: #{gem_forward.1} parent=0 // pred_fallthru
    _
  // Predicated region
  $region6: #{gem_forward.1} parent=0 // pred_check
    _
  $region7: #{gem_forward.1} parent=0 // pred_check_branch
    %11 = sbr.rel (0) target = $region9
  $region8: #{gem_forward.1} parent=0 // pred_region
    _
  $region9: #{gem_forward.1} parent=0 // pred_fallthru
    _
  %p12 = scmp.eq.s32.totalorder 0, 0
  // Predicated region
  $region10: #{gem_forward.1} parent=0 // pred_check
    %p13 = pneg %p12
  $region11: #{gem_forward.1} parent=0 // pred_check_branch
    %15 = sbr.rel (%p13) target = $region13
  $region12: #{gem_forward.1} parent=0 // pred_region
    %vm16 = vcmask 7168
    %17 = vst.msk [vmem:[#allocation2] sm:$0xff] %vm16, 0.0
  $region13: #{gem_forward.1} parent=0 // pred_fallthru
    _
  %s18 = sld [smem:[#allocation3]]
  %v19 = vld [vmem:[%s1] sm:$0xff]
  %v20 = vld [vmem:[%s1 + $0x8] sm:$0xff]
  %v21 = vmax.f32 %v19, 1e-06
  %v22 = vmax.f32 %v20, 1e-06
  %v23 = vlog2.pop %v21
  %v24 = vmul.f32 %v23, 0.6931472
  %v25 = vlog2.pop %v22
  %v26 = vmul.f32 %v25, 0.6931472
  %v27 = vstv %s18
  %v28 = vmul.f32 %v27, %v24
  %v29 = vmul.f32 %v27, %v26
  %v30 = vmul.f32 %v28, 1.442695
  %v31 = vpow.pop %v30
  %v32 = vmul.f32 %v29, 1.442695
  %v33 = vpow.pop %v32
  %s34 = smul.u32 0, 256
  %v35 = vlaneseq
  %v36 = vand.u32 %v35, 127
  %v37 = vadd.s32 %v36, 128
  %v38 = vstv %s34
  %v39 = vadd.s32 %v38, %v36
  %v40 = vadd.s32 %v38, %v37
  %vm41 = vcmp.lt.s32.totalorder %v39, 256
  %vm42 = vcmp.lt.s32.totalorder %v40, 256
  %v43 = vsel %vm41, %v31, 0.0
  %v44 = vsel %vm42, %v33, 0.0
  %v45 = vld [vmem:[#allocation2] sm:$0xff]
  %v46 = vadd.f32 %v43, %v44
  %47 = vadd.xlane.f32.xlu0 %v46
  %v48 = vpop.xlane.xlu0 %47
  %v49 = vadd.f32 %v45, %v48
  %vm50 = vcmask 7168
  %51 = vst.msk [vmem:[#allocation2] sm:$0xff] %vm50, %v49
  // Predicated region
  $region14: #{gem_forward.1} parent=0 // pred_check
    %p52 = pneg %p12
  $region15: #{gem_forward.1} parent=0 // pred_check_branch
    %54 = sbr.rel (%p52) target = $region17
  $region16: #{gem_forward.1} parent=0 // pred_region
    %v55 = vld [vmem:[#allocation2] sm:$0xff]
    %v56 = vmul.f32 %v55, 0.00390625
    %v57 = vlog2.pop %v56
    %v58 = vmul.f32 %v57, 0.6931472
    %v59 = vrcp.pop %v27
    %v60 = vmul.f32 %v58, %v59
    %v61 = vmul.f32 %v60, 1.442695
    %v62 = vpow.pop %v61
    %63 = vst.msk [vmem:[%s2] sm:$0xff] %vm50, %v62
  $region17: #{gem_forward.1} parent=0 // pred_fallthru
    _
  // Predicated region
  $region18: #{gem_forward.1} parent=0 // pred_check
    _
  $region19: #{gem_forward.1} parent=0 // pred_check_branch
    %65 = sbr.rel (0) target = $region21
  $region20: #{gem_forward.1} parent=0 // pred_region
    _
  $region21: #{gem_forward.1} parent=0 // pred_fallthru
    _
  // Predicated region
  $region22: #{gem_forward.1} parent=0 // pred_check
    _
  $region23: #{gem_forward.1} parent=0 // pred_check_branch
    %67 = sbr.rel (0) target = $region25
  $region24: #{gem_forward.1} parent=0 // pred_region
    _
  $region25: #{gem_forward.1} parent=0 // pred_fallthru
    _

</llo_original>
